<compile_context>
chip_gen: v7x
topology: tpu7x:2x2x1
jax: 0.10.0
libtpu: 0.0.40
codegen_flags: <defaults>
</compile_context>

<pallas_src>
import jax
import jax.numpy as jnp
from jax.experimental import pallas as pl
from jax.experimental.pallas import tpu as pltpu


def _round_up(x, m):
    return ((x + m - 1) // m) * m


def shareconcat_kernel(mix_ref, itf_ref, w1_ref, b1_ref,
                       w2a_ref, w2b_ref, b2_ref, out_ref):
    cdt = w1_ref.dtype                       # MXU compute dtype (bf16)
    # f32 -> bf16 cast happens here, on the VMEM tile (no extra HBM pass).
    xm = mix_ref[...].astype(cdt)
    xs = itf_ref[...].astype(cdt)
    # Shared fc1 on both inputs (bf16 MXU matmuls, f32 accumulation) + bias + ReLU.
    hm = jnp.dot(xm, w1_ref[...], preferred_element_type=jnp.float32) + b1_ref[...]
    hs = jnp.dot(xs, w1_ref[...], preferred_element_type=jnp.float32) + b1_ref[...]
    hm = jnp.maximum(hm, 0.0).astype(cdt)
    hs = jnp.maximum(hs, 0.0).astype(cdt)
    # fc2 on the (virtual) concatenation via split weights.
    # relu(cat(hm, hs)) == cat(hm, hs) since hm, hs are already non-negative.
    y = (jnp.dot(hm, w2a_ref[...], preferred_element_type=jnp.float32)
         + jnp.dot(hs, w2b_ref[...], preferred_element_type=jnp.float32)
         + b2_ref[...])
    out_ref[...] = y.astype(out_ref.dtype)


def prepare_params(params, embed_dim, compute_dtype=jnp.bfloat16):
    """One-time weight prep: transpose fc1, transpose+split fc2, cast to bf16."""
    E = embed_dim
    w1, b1, w2, b2 = params["w1"], params["b1"], params["w2"], params["b2"]
    # PyTorch nn.Linear: y = x @ W.T + b, W has shape (out, in).
    w1t = w1.T                               # (E, E)
    w2t = w2.T                               # (2E, E)
    return {
        "w1t": w1t.astype(compute_dtype),            # fc1 (shared)
        "w2a": w2t[:E].astype(compute_dtype),        # fc2 half for relu(fc1(mixtures))
        "w2b": w2t[E:].astype(compute_dtype),        # fc2 half for relu(fc1(itf_speaker))
        "b1": b1.reshape(1, E).astype(jnp.float32),
        "b2": b2.reshape(1, E).astype(jnp.float32),
        "embed_dim": E,
        "compute_dtype": compute_dtype,
    }


def shareconcat_forward(mixtures, itf_speaker, kparams, *,
                        row_tile=512, out_dtype=None):
    """mixtures, itf_speaker: [B, L, E]  ->  [B, L, E] (out_dtype, default input dtype)."""
    B, L, E = mixtures.shape
    assert E == kparams["embed_dim"]
    out_dtype = mixtures.dtype if out_dtype is None else jnp.dtype(out_dtype)

    rows = B * L
    # Free reshapes (contiguous collapse of leading dims): no extra HBM traffic.
    mix2d = mixtures.reshape(rows, E)
    itf2d = itf_speaker.reshape(rows, E)

    # Row tile: multiple of 8, big (512) to amortize per-step pipeline overhead,
    # but capped so the grid has >= 2 tiles when rows allow (v7x has 2 TensorCores).
    rt = max(8, min(_round_up(row_tile, 8), _round_up(rows, 8)))
    if rows >= 16:
        rt = min(rt, _round_up(pl.cdiv(rows, 2), 8))
    if rows < 8:
        rt = rows                      # block == full row extent for tiny inputs
    grid = (pl.cdiv(rows, rt),)

    # Explicit VMEM budget (v7x only has 64 MiB per TC; scoped default is 32 MiB).
    in_isz = jnp.dtype(mixtures.dtype).itemsize
    out_isz = jnp.dtype(out_dtype).itemsize
    w_isz = jnp.dtype(kparams["w1t"].dtype).itemsize
    est = (2 * 2 * rt * E * in_isz         # two activation inputs, double-buffered
           + 2 * rt * E * out_isz          # output, double-buffered
           + 3 * E * E * w_isz             # weights, single-buffered
           + 2 * E * 4)                    # biases (f32)
    vmem_limit = int(min(max(2 * est, 8 << 20), 48 << 20))

    # Grid-invariant operands: single-buffered (index_map is constant, no re-DMA).
    resident = pl.Buffered(1)
    weight_spec = pl.BlockSpec((E, E), lambda i: (0, 0), pipeline_mode=resident)
    bias_spec = pl.BlockSpec((1, E), lambda i: (0, 0), pipeline_mode=resident)
    row_spec = pl.BlockSpec((rt, E), lambda i: (i, 0))

    out = pl.pallas_call(
        shareconcat_kernel,
        out_shape=jax.ShapeDtypeStruct((rows, E), out_dtype),
        grid_spec=pltpu.PrefetchScalarGridSpec(
            num_scalar_prefetch=0,
            grid=grid,
            in_specs=[
                row_spec,          # mixtures rows      [rt, E] (f32, cast in-kernel)
                row_spec,          # itf_speaker rows   [rt, E]
                weight_spec,       # W1.T   (shared fc1)
                bias_spec,         # b1
                weight_spec,       # W2.T top half
                weight_spec,       # W2.T bottom half
                bias_spec,         # b2
            ],
            out_specs=row_spec,
        ),
        compiler_params=pltpu.CompilerParams(
            # Independent row tiles -> sharded across TensorCores (v7x megacore).
            dimension_semantics=("parallel",),
            vmem_limit_bytes=vmem_limit),
    )(mix2d, itf2d, kparams["w1t"], kparams["b1"],
      kparams["w2a"], kparams["w2b"], kparams["b2"])

    return out.reshape(B, L, E)


def init_params(key, embed_dim):
    k1, k2, k3, k4 = jax.random.split(key, 4)
    # Deterministic synthetic init (uniform, roughly matching nn.Linear scale).
    lim1 = 1.0 / jnp.sqrt(1.0 * embed_dim)     # fc1: Linear(E, E)
    lim2 = 1.0 / jnp.sqrt(2.0 * embed_dim)     # fc2: Linear(2E, E)
    return {
        "w1": jax.random.uniform(k1, (embed_dim, embed_dim),
                                 jnp.float32, -lim1, lim1),
        "b1": jax.random.uniform(k2, (embed_dim,), jnp.float32, -lim1, lim1),
        "w2": jax.random.uniform(k3, (embed_dim, 2 * embed_dim),
                                 jnp.float32, -lim2, lim2),
        "b2": jax.random.uniform(k4, (embed_dim,), jnp.float32, -lim2, lim2),
    }


def reference_forward(mixtures, itf_speaker, params):
    m = jnp.maximum(mixtures @ params["w1"].T + params["b1"], 0.0)
    s = jnp.maximum(itf_speaker @ params["w1"].T + params["b1"], 0.0)
    x = jnp.concatenate([m, s], axis=-1)
    x = jnp.maximum(x, 0.0)
    return x @ params["w2"].T + params["b2"]


if __name__ == "__main__":
    key = jax.random.PRNGKey(0)
    k_p, k_m, k_s = jax.random.split(key, 3)

    B, L, E = 2, 8, 32
    params = init_params(k_p, E)
    kparams = prepare_params(params, E)        # one-time weight prep (bf16, transposed/split)

    mixtures = jax.random.normal(k_m, (B, L, E), jnp.float32)
    itf_speaker = jax.random.normal(k_s, (B, L, E), jnp.float32)

    out = shareconcat_forward(mixtures, itf_speaker, kparams)
    out = jax.block_until_ready(out)

    ref = reference_forward(mixtures, itf_speaker, params)
    assert out.shape == (B, L, E)
    assert out.dtype == mixtures.dtype
    # bf16 matmul inputs with f32 accumulation -> relaxed tolerance vs f32 reference.
    assert jnp.allclose(out, ref, atol=5e-2, rtol=5e-2), \
        float(jnp.max(jnp.abs(out - ref)))

    # Optional narrow-output path (halves output HBM traffic / vst pressure).
    out_bf16 = jax.block_until_ready(
        shareconcat_forward(mixtures, itf_speaker, kparams, out_dtype=jnp.bfloat16))
    assert out_bf16.shape == (B, L, E)
    assert out_bf16.dtype == jnp.bfloat16
    assert jnp.allclose(out_bf16.astype(jnp.float32), ref, atol=1e-1, rtol=1e-1)

    print("KERNEL_OK")
</pallas_src>

<mosaic_0001>
module attributes {stable_mosaic.version = 11 : i64} {
  func.func @shareconcat_kernel(%arg0: i32, %arg1: memref<8x32xf32, #tpu.memory_space<vmem>>, %arg2: memref<8x32xf32, #tpu.memory_space<vmem>>, %arg3: memref<32x32xbf16, #tpu.memory_space<vmem>>, %arg4: memref<1x32xf32, #tpu.memory_space<vmem>>, %arg5: memref<32x32xbf16, #tpu.memory_space<vmem>>, %arg6: memref<32x32xbf16, #tpu.memory_space<vmem>>, %arg7: memref<1x32xf32, #tpu.memory_space<vmem>>, %arg8: memref<8x32xf32, #tpu.memory_space<vmem>>) attributes {dimension_semantics = [#tpu.dimension_semantics<parallel>], iteration_bounds = array<i64: 2>, scalar_prefetch = 0 : i64, scratch_operands = 0 : i64, tpu.core_type = #tpu.core_type<tc>, window_params = [{transform_indices = @transform_0, window_bounds = array<i64: 8, 32>}, {transform_indices = @transform_1, window_bounds = array<i64: 8, 32>}, {pipeline_mode = #tpu.pipeline_mode<synchronous>, transform_indices = @transform_2, window_bounds = array<i64: 32, 32>}, {pipeline_mode = #tpu.pipeline_mode<synchronous>, transform_indices = @transform_3, window_bounds = array<i64: 1, 32>}, {pipeline_mode = #tpu.pipeline_mode<synchronous>, transform_indices = @transform_4, window_bounds = array<i64: 32, 32>}, {pipeline_mode = #tpu.pipeline_mode<synchronous>, transform_indices = @transform_5, window_bounds = array<i64: 32, 32>}, {pipeline_mode = #tpu.pipeline_mode<synchronous>, transform_indices = @transform_6, window_bounds = array<i64: 1, 32>}, {transform_indices = @transform_7, window_bounds = array<i64: 8, 32>}]} {
    %c0 = arith.constant 0 : index
    %c0_0 = arith.constant 0 : index
    %0 = vector.load %arg1[%c0, %c0_0] : memref<8x32xf32, #tpu.memory_space<vmem>>, vector<8x32xf32>
    %1 = arith.truncf %0 : vector<8x32xf32> to vector<8x32xbf16>
    %c0_1 = arith.constant 0 : index
    %c0_2 = arith.constant 0 : index
    %2 = vector.load %arg2[%c0_1, %c0_2] : memref<8x32xf32, #tpu.memory_space<vmem>>, vector<8x32xf32>
    %3 = arith.truncf %2 : vector<8x32xf32> to vector<8x32xbf16>
    %c0_3 = arith.constant 0 : index
    %c0_4 = arith.constant 0 : index
    %4 = vector.load %arg3[%c0_3, %c0_4] : memref<32x32xbf16, #tpu.memory_space<vmem>>, vector<32x32xbf16>
    %cst = arith.constant dense<0.000000e+00> : vector<8x32xf32>
    %5 = tpu.matmul %1, %4, %cst {dimension_numbers = #tpu.dot_dimension_numbers<[1], [0], [0], [1], [0, 0, 1, 1], [], []>} : vector<8x32xbf16>, vector<32x32xbf16>, vector<8x32xf32> -> vector<8x32xf32>
    %c0_5 = arith.constant 0 : index
    %c0_6 = arith.constant 0 : index
    %6 = vector.load %arg4[%c0_5, %c0_6] : memref<1x32xf32, #tpu.memory_space<vmem>>, vector<1x32xf32>
    %7 = vector.broadcast %6 : vector<1x32xf32> to vector<8x32xf32>
    %8 = arith.addf %5, %7 : vector<8x32xf32>
    %c0_7 = arith.constant 0 : index
    %c0_8 = arith.constant 0 : index
    %9 = vector.load %arg3[%c0_7, %c0_8] : memref<32x32xbf16, #tpu.memory_space<vmem>>, vector<32x32xbf16>
    %cst_9 = arith.constant dense<0.000000e+00> : vector<8x32xf32>
    %10 = tpu.matmul %3, %9, %cst_9 {dimension_numbers = #tpu.dot_dimension_numbers<[1], [0], [0], [1], [0, 0, 1, 1], [], []>} : vector<8x32xbf16>, vector<32x32xbf16>, vector<8x32xf32> -> vector<8x32xf32>
    %c0_10 = arith.constant 0 : index
    %c0_11 = arith.constant 0 : index
    %11 = vector.load %arg4[%c0_10, %c0_11] : memref<1x32xf32, #tpu.memory_space<vmem>>, vector<1x32xf32>
    %12 = vector.broadcast %11 : vector<1x32xf32> to vector<8x32xf32>
    %13 = arith.addf %10, %12 : vector<8x32xf32>
    %cst_12 = arith.constant 0.000000e+00 : f32
    %14 = vector.broadcast %cst_12 : f32 to vector<8x32xf32>
    %15 = arith.maximumf %8, %14 : vector<8x32xf32>
    %16 = arith.truncf %15 : vector<8x32xf32> to vector<8x32xbf16>
    %cst_13 = arith.constant 0.000000e+00 : f32
    %17 = vector.broadcast %cst_13 : f32 to vector<8x32xf32>
    %18 = arith.maximumf %13, %17 : vector<8x32xf32>
    %19 = arith.truncf %18 : vector<8x32xf32> to vector<8x32xbf16>
    %c0_14 = arith.constant 0 : index
    %c0_15 = arith.constant 0 : index
    %20 = vector.load %arg5[%c0_14, %c0_15] : memref<32x32xbf16, #tpu.memory_space<vmem>>, vector<32x32xbf16>
    %cst_16 = arith.constant dense<0.000000e+00> : vector<8x32xf32>
    %21 = tpu.matmul %16, %20, %cst_16 {dimension_numbers = #tpu.dot_dimension_numbers<[1], [0], [0], [1], [0, 0, 1, 1], [], []>} : vector<8x32xbf16>, vector<32x32xbf16>, vector<8x32xf32> -> vector<8x32xf32>
    %c0_17 = arith.constant 0 : index
    %c0_18 = arith.constant 0 : index
    %22 = vector.load %arg6[%c0_17, %c0_18] : memref<32x32xbf16, #tpu.memory_space<vmem>>, vector<32x32xbf16>
    %cst_19 = arith.constant dense<0.000000e+00> : vector<8x32xf32>
    %23 = tpu.matmul %19, %22, %cst_19 {dimension_numbers = #tpu.dot_dimension_numbers<[1], [0], [0], [1], [0, 0, 1, 1], [], []>} : vector<8x32xbf16>, vector<32x32xbf16>, vector<8x32xf32> -> vector<8x32xf32>
    %24 = arith.addf %21, %23 : vector<8x32xf32>
    %c0_20 = arith.constant 0 : index
    %c0_21 = arith.constant 0 : index
    %25 = vector.load %arg7[%c0_20, %c0_21] : memref<1x32xf32, #tpu.memory_space<vmem>>, vector<1x32xf32>
    %26 = vector.broadcast %25 : vector<1x32xf32> to vector<8x32xf32>
    %27 = arith.addf %24, %26 : vector<8x32xf32>
    %c0_22 = arith.constant 0 : index
    %c0_23 = arith.constant 0 : index
    %28 = vector.load %arg8[%c0_22, %c0_23] : memref<8x32xf32, #tpu.memory_space<vmem>>, vector<8x32xf32>
    tpu.vector_store %arg8[%c0_22, %c0_23], %27 {strides = array<i32>} : memref<8x32xf32, #tpu.memory_space<vmem>>, vector<8x32xf32>,
    return
  }
  func.func @transform_0(%arg0: i32) -> (i32, i32) {
    %c0_i32 = arith.constant 0 : i32
    %c0_i32_0 = arith.constant 0 : i32
    return %arg0, %c0_i32 : i32, i32
  }
  func.func @transform_1(%arg0: i32) -> (i32, i32) {
    %c0_i32 = arith.constant 0 : i32
    %c0_i32_0 = arith.constant 0 : i32
    return %arg0, %c0_i32 : i32, i32
  }
  func.func @transform_2(%arg0: i32) -> (i32, i32) {
    %c0_i32 = arith.constant 0 : i32
    %c0_i32_0 = arith.constant 0 : i32
    %c0_i32_1 = arith.constant 0 : i32
    return %c0_i32, %c0_i32_0 : i32, i32
  }
  func.func @transform_3(%arg0: i32) -> (i32, i32) {
    %c0_i32 = arith.constant 0 : i32
    %c0_i32_0 = arith.constant 0 : i32
    %c0_i32_1 = arith.constant 0 : i32
    return %c0_i32, %c0_i32_0 : i32, i32
  }
  func.func @transform_4(%arg0: i32) -> (i32, i32) {
    %c0_i32 = arith.constant 0 : i32
    %c0_i32_0 = arith.constant 0 : i32
    %c0_i32_1 = arith.constant 0 : i32
    return %c0_i32, %c0_i32_0 : i32, i32
  }
  func.func @transform_5(%arg0: i32) -> (i32, i32) {
    %c0_i32 = arith.constant 0 : i32
    %c0_i32_0 = arith.constant 0 : i32
    %c0_i32_1 = arith.constant 0 : i32
    return %c0_i32, %c0_i32_0 : i32, i32
  }
  func.func @transform_6(%arg0: i32) -> (i32, i32) {
    %c0_i32 = arith.constant 0 : i32
    %c0_i32_0 = arith.constant 0 : i32
    %c0_i32_1 = arith.constant 0 : i32
    return %c0_i32, %c0_i32_0 : i32, i32
  }
  func.func @transform_7(%arg0: i32) -> (i32, i32) {
    %c0_i32 = arith.constant 0 : i32
    %c0_i32_0 = arith.constant 0 : i32
    return %arg0, %c0_i32 : i32, i32
  }
}

</mosaic_0001>

<llo_original>
// kernel: tpu_custom_call.1
$region0: #{tpu_custom_call.1}
  #allocation0 [shape = 'u32[]', space=smem, size = 0x4, offset = 0x4, fixed_abs, tag = 'smem constant byte address 0x4 - core index']
  #allocation1 [shape = 'u32[144,128]{1,0:T(1,128)}', space=vmem, size = 0x12000, scoped, tag = 'internal scratch']
  %s0 = inlined_call_operand.hbm [shape: f32[16,32], index: 0, kind: input, shape index: {}]
  %s1 = inlined_call_operand.hbm [shape: f32[16,32], index: 1, kind: input, shape index: {}]
  %s2 = inlined_call_operand.hbm [shape: bf16[32,32], index: 2, kind: input, shape index: {}]
  %s3 = inlined_call_operand.vmem [shape: f32[1,32], index: 3, kind: input, shape index: {}]
  %s4 = inlined_call_operand.hbm [shape: bf16[32,32], index: 4, kind: input, shape index: {}]
  %s5 = inlined_call_operand.vmem [shape: bf16[32,32], index: 5, kind: input, shape index: {}]
  %s6 = inlined_call_operand.vmem [shape: f32[1,32], index: 6, kind: input, shape index: {}]
  %s7 = inlined_call_operand.hbm [shape: f32[16,32], index: 7, kind: output, shape index: {}]
  %s8 = sld [smem:[#allocation0]]
  $region77: #{tpu_custom_call.1} parent=0
    _
  %s10 = ssub.s32 1, %s8
  %s11 = scalar_select 0, %s10, %s8
  $region1: #{tpu_custom_call.1} parent=0
    #allocation2 [shape = 'u8[8192]{0}', space=vmem, size = 0x2000, scoped, tag = 'input window, operand 0']
    #allocation3 [shape = 's32[2]{0}', space=sflag, size = 0x8, scoped, tag = 'scoped memory for tpu_custom_call.1']
    #allocation4 [shape = 's32[2]{0}', space=sflag, size = 0x8, scoped, tag = 'scoped memory for tpu_custom_call.1']
    #allocation5 [shape = 'u8[8192]{0}', space=vmem, size = 0x2000, scoped, tag = 'input window, operand 1']
    #allocation6 [shape = 's32[2]{0}', space=sflag, size = 0x8, scoped, tag = 'scoped memory for tpu_custom_call.1']
    #allocation7 [shape = 'u8[8192]{0}', space=vmem, size = 0x2000, scoped, tag = 'input window, operand 2, single buffered']
    #allocation8 [shape = 'u8[8192]{0}', space=vmem, size = 0x2000, scoped, tag = 'input window, operand 4, single buffered']
    #allocation9 [shape = 's32[1]{0}', space=sflag, size = 0x4, scoped, tag = 'scoped memory for tpu_custom_call.1']
    #allocation10 [shape = 'u8[8192]{0}', space=vmem, size = 0x2000, scoped, tag = 'output window, operand 0']
    %12 = vsyncpa [#allocation3], 0
    %s13 = scalar_lea.sflag [#allocation3], 1
    %14 = vsyncpa %s13, 0
    %15 = vsyncpa [#allocation6], 0
    %s16 = scalar_lea.sflag [#allocation6], 1
    %17 = vsyncpa %s16, 0
    %18 = vsyncpa [#allocation9], 0
    %19 = vsyncpa [#allocation4], 0
    %s20 = scalar_lea.sflag [#allocation4], 1
    %21 = vsyncpa %s20, 0
    loop: start=0, step=1, limit=4
    $region2: #{tpu_custom_call.1} parent=1 // loop_pre_header
      _
    $region3: #{tpu_custom_call.1} parent=1 // loop_header
      %s23 = sphi 0, %s27
      %p24 = scmp.ge.s32.totalorder %s23, 4
      %s33 = sphi 0, %s35
      %s36 = sphi 0, %s33
      %s37 = sphi 0, %s36
      %s53 = sphi 0, %s37
      %s59 = sphi 0, %s61
      %s62 = sphi 0, %s59
      %s63 = sphi 0, %s62
      %s79 = sphi 0, %s63
      %s83 = sphi 0, %s83
      %s85 = sphi 0, %s83
      %s86 = sphi 0, %s85
      %s100 = sphi 0, %s86
      %s104 = sphi 0, %s104
      %s106 = sphi 0, %s104
      %s107 = sphi 0, %s106
      %s121 = sphi 0, %s107
      %s125 = sphi 0, %s125
      %s127 = sphi 0, %s125
      %s128 = sphi 0, %s127
      %s142 = sphi 0, %s128
      %s146 = sphi 0, %s146
      %s148 = sphi 0, %s146
      %s149 = sphi 0, %s148
      %s163 = sphi 0, %s149
      %s167 = sphi 0, %s167
      %s169 = sphi 0, %s167
      %s170 = sphi 0, %s169
      %s184 = sphi 0, %s170
      %s190 = sphi 0, %s192
      %s193 = sphi 0, %s190
      %s194 = sphi 0, %s193
      %s210 = sphi 0, %s194
    $region4: #{tpu_custom_call.1} parent=1 // loop_header_branch
      %26 = sbr.rel (%p24) target = $region8
    $region5: #{tpu_custom_call.1} parent=1 // loop_body
      %s28 = ssub.s32 %s23, 1
      %s29 = ssub.s32 %s23, 2
      %s30 = sadd.s32 %s23, 1
      %s31 = ssub.s32 %s23, %s30
      %p32 = scmp.eq.s32.totalorder %s31, 0
      %s34 = sadd.s32 %s33, 1
      %s35 = scalar_select %p32, %s33, %s34
      %p38 = pneg %p32
      %p39 = scmp.eq.s32.totalorder %s23, 1
      %p40 = por %p38, %p39
      %p41 = scmp.ne.s32.totalorder %s33, %s36
      %p42 = scmp.eq.s32.totalorder %s23, 0
      %p43 = por %p41, %p42
      %p44 = scmp.ne.s32.totalorder %s33, %s36
      %p45 = scmp.eq.s32.totalorder %s28, 1
      %p46 = por %p44, %p45
      %p47 = scmp.ne.s32.totalorder %s36, %s37
      %p48 = scmp.eq.s32.totalorder %s28, 0
      %p49 = por %p47, %p48
      %p50 = scmp.ne.s32.totalorder %s36, %s37
      %p51 = scmp.eq.s32.totalorder %s29, 1
      %p52 = por %p50, %p51
      %p54 = scmp.ne.s32.totalorder %s37, %s53
      %p55 = scmp.eq.s32.totalorder %s29, 0
      %p56 = por %p54, %p55
      %s57 = ssub.s32 %s23, %s30
      %p58 = scmp.eq.s32.totalorder %s57, 0
      %s60 = sadd.s32 %s59, 1
      %s61 = scalar_select %p58, %s59, %s60
      %p64 = pneg %p58
      %p65 = scmp.eq.s32.totalorder %s23, 1
      %p66 = por %p64, %p65
      %p67 = scmp.ne.s32.totalorder %s59, %s62
      %p68 = scmp.eq.s32.totalorder %s23, 0
      %p69 = por %p67, %p68
      %p70 = scmp.ne.s32.totalorder %s59, %s62
      %p71 = scmp.eq.s32.totalorder %s28, 1
      %p72 = por %p70, %p71
      %p73 = scmp.ne.s32.totalorder %s62, %s63
      %p74 = scmp.eq.s32.totalorder %s28, 0
      %p75 = por %p73, %p74
      %p76 = scmp.ne.s32.totalorder %s62, %s63
      %p77 = scmp.eq.s32.totalorder %s29, 1
      %p78 = por %p76, %p77
      %p80 = scmp.ne.s32.totalorder %s63, %s79
      %p81 = scmp.eq.s32.totalorder %s29, 0
      %p82 = por %p80, %p81
      %s84 = sadd.s32 %s83, 1
      %p87 = scmp.eq.s32.totalorder %s23, 1
      %p88 = scmp.ne.s32.totalorder %s83, %s85
      %p89 = scmp.eq.s32.totalorder %s23, 0
      %p90 = por %p88, %p89
      %p91 = scmp.ne.s32.totalorder %s83, %s85
      %p92 = scmp.eq.s32.totalorder %s28, 1
      %p93 = por %p91, %p92
      %p94 = scmp.ne.s32.totalorder %s85, %s86
      %p95 = scmp.eq.s32.totalorder %s28, 0
      %p96 = por %p94, %p95
      %p97 = scmp.ne.s32.totalorder %s85, %s86
      %p98 = scmp.eq.s32.totalorder %s29, 1
      %p99 = por %p97, %p98
      %p101 = scmp.ne.s32.totalorder %s86, %s100
      %p102 = scmp.eq.s32.totalorder %s29, 0
      %p103 = por %p101, %p102
      %s105 = sadd.s32 %s104, 1
      %p108 = scmp.eq.s32.totalorder %s23, 1
      %p109 = scmp.ne.s32.totalorder %s104, %s106
      %p110 = scmp.eq.s32.totalorder %s23, 0
      %p111 = por %p109, %p110
      %p112 = scmp.ne.s32.totalorder %s104, %s106
      %p113 = scmp.eq.s32.totalorder %s28, 1
      %p114 = por %p112, %p113
      %p115 = scmp.ne.s32.totalorder %s106, %s107
      %p116 = scmp.eq.s32.totalorder %s28, 0
      %p117 = por %p115, %p116
      %p118 = scmp.ne.s32.totalorder %s106, %s107
      %p119 = scmp.eq.s32.totalorder %s29, 1
      %p120 = por %p118, %p119
      %p122 = scmp.ne.s32.totalorder %s107, %s121
      %p123 = scmp.eq.s32.totalorder %s29, 0
      %p124 = por %p122, %p123
      %s126 = sadd.s32 %s125, 1
      %p129 = scmp.eq.s32.totalorder %s23, 1
      %p130 = scmp.ne.s32.totalorder %s125, %s127
      %p131 = scmp.eq.s32.totalorder %s23, 0
      %p132 = por %p130, %p131
      %p133 = scmp.ne.s32.totalorder %s125, %s127
      %p134 = scmp.eq.s32.totalorder %s28, 1
      %p135 = por %p133, %p134
      %p136 = scmp.ne.s32.totalorder %s127, %s128
      %p137 = scmp.eq.s32.totalorder %s28, 0
      %p138 = por %p136, %p137
      %p139 = scmp.ne.s32.totalorder %s127, %s128
      %p140 = scmp.eq.s32.totalorder %s29, 1
      %p141 = por %p139, %p140
      %p143 = scmp.ne.s32.totalorder %s128, %s142
      %p144 = scmp.eq.s32.totalorder %s29, 0
      %p145 = por %p143, %p144
      %s147 = sadd.s32 %s146, 1
      %p150 = scmp.eq.s32.totalorder %s23, 1
      %p151 = scmp.ne.s32.totalorder %s146, %s148
      %p152 = scmp.eq.s32.totalorder %s23, 0
      %p153 = por %p151, %p152
      %p154 = scmp.ne.s32.totalorder %s146, %s148
      %p155 = scmp.eq.s32.totalorder %s28, 1
      %p156 = por %p154, %p155
      %p157 = scmp.ne.s32.totalorder %s148, %s149
      %p158 = scmp.eq.s32.totalorder %s28, 0
      %p159 = por %p157, %p158
      %p160 = scmp.ne.s32.totalorder %s148, %s149
      %p161 = scmp.eq.s32.totalorder %s29, 1
      %p162 = por %p160, %p161
      %p164 = scmp.ne.s32.totalorder %s149, %s163
      %p165 = scmp.eq.s32.totalorder %s29, 0
      %p166 = por %p164, %p165
      %s168 = sadd.s32 %s167, 1
      %p171 = scmp.eq.s32.totalorder %s23, 1
      %p172 = scmp.ne.s32.totalorder %s167, %s169
      %p173 = scmp.eq.s32.totalorder %s23, 0
      %p174 = por %p172, %p173
      %p175 = scmp.ne.s32.totalorder %s167, %s169
      %p176 = scmp.eq.s32.totalorder %s28, 1
      %p177 = por %p175, %p176
      %p178 = scmp.ne.s32.totalorder %s169, %s170
      %p179 = scmp.eq.s32.totalorder %s28, 0
      %p180 = por %p178, %p179
      %p181 = scmp.ne.s32.totalorder %s169, %s170
      %p182 = scmp.eq.s32.totalorder %s29, 1
      %p183 = por %p181, %p182
      %p185 = scmp.ne.s32.totalorder %s170, %s184
      %p186 = scmp.eq.s32.totalorder %s29, 0
      %p187 = por %p185, %p186
      %s188 = ssub.s32 %s23, %s30
      %p189 = scmp.eq.s32.totalorder %s188, 0
      %s191 = sadd.s32 %s190, 1
      %s192 = scalar_select %p189, %s190, %s191
      %p195 = pneg %p189
      %p196 = scmp.eq.s32.totalorder %s23, 1
      %p197 = por %p195, %p196
      %p198 = scmp.ne.s32.totalorder %s190, %s193
      %p199 = scmp.eq.s32.totalorder %s23, 0
      %p200 = por %p198, %p199
      %p201 = scmp.ne.s32.totalorder %s190, %s193
      %p202 = scmp.eq.s32.totalorder %s28, 1
      %p203 = por %p201, %p202
      %p204 = scmp.ne.s32.totalorder %s193, %s194
      %p205 = scmp.eq.s32.totalorder %s28, 0
      %p206 = por %p204, %p205
      %p207 = scmp.ne.s32.totalorder %s193, %s194
      %p208 = scmp.eq.s32.totalorder %s29, 1
      %p209 = por %p207, %p208
      %p211 = scmp.ne.s32.totalorder %s194, %s210
      %p212 = scmp.eq.s32.totalorder %s29, 0
      %p213 = por %p211, %p212
      %p214 = scmp.le.s32.totalorder 1, %s23
      %p215 = scmp.lt.s32.totalorder %s23, 3
      %p216 = pnand %p214, %p215
      %p217 = pneg %p216
      // Predicated region
      $region9: #{tpu_custom_call.1} parent=5 // pred_check
        _
      $region10: #{tpu_custom_call.1} parent=5 // pred_check_branch
        %219 = sbr.rel (%p216) target = $region12
      $region11: #{tpu_custom_call.1} parent=5 // pred_region
        %s220 = ssub.s32 %s23, 1
        // Predicated region
        $region13: #{tpu_custom_call.1} parent=11 // pred_check
          %p221 = pneg %p96
        $region14: #{tpu_custom_call.1} parent=11 // pred_check_branch
          %223 = sbr.rel (%p221) target = $region16
        $region15: #{tpu_custom_call.1} parent=11 // pred_region
          %s225 = ssub.s32 256, 256
          %226 = vsyncadd [#allocation6], %s225
          %s227 = sshll.u32 [#allocation7], 4
          %s228 = int_to_ptr.vmem [resolvable:$true] %s227
          %233 = dma.hbm_to_vmem [thread:$0]  %s2, 256, %s228, [#allocation6], 64, 64, 4
        $region16: #{tpu_custom_call.1} parent=11 // pred_fallthru
          _
        // Predicated region
        $region17: #{tpu_custom_call.1} parent=11 // pred_check
          %p234 = pneg %p117
        $region18: #{tpu_custom_call.1} parent=11 // pred_check_branch
          %236 = sbr.rel (%p234) target = $region20
        $region19: #{tpu_custom_call.1} parent=11 // pred_region
          _
        $region20: #{tpu_custom_call.1} parent=11 // pred_fallthru
          _
        // Predicated region
        $region21: #{tpu_custom_call.1} parent=11 // pred_check
          %p237 = pneg %p138
        $region22: #{tpu_custom_call.1} parent=11 // pred_check_branch
          %239 = sbr.rel (%p237) target = $region24
        $region23: #{tpu_custom_call.1} parent=11 // pred_region
          %s241 = ssub.s32 256, 256
          %242 = vsyncadd [#allocation9], %s241
          %s243 = sshll.u32 [#allocation8], 4
          %s244 = int_to_ptr.vmem [resolvable:$true] %s243
          %249 = dma.hbm_to_vmem [thread:$0]  %s4, 256, %s244, [#allocation9], 64, 64, 4
        $region24: #{tpu_custom_call.1} parent=11 // pred_fallthru
          _
        // Predicated region
        $region25: #{tpu_custom_call.1} parent=11 // pred_check
          %p250 = pneg %p159
        $region26: #{tpu_custom_call.1} parent=11 // pred_check_branch
          %252 = sbr.rel (%p250) target = $region28
        $region27: #{tpu_custom_call.1} parent=11 // pred_region
          _
        $region28: #{tpu_custom_call.1} parent=11 // pred_fallthru
          _
        // Predicated region
        $region29: #{tpu_custom_call.1} parent=11 // pred_check
          %p253 = pneg %p180
        $region30: #{tpu_custom_call.1} parent=11 // pred_check_branch
          %255 = sbr.rel (%p253) target = $region32
        $region31: #{tpu_custom_call.1} parent=11 // pred_region
          _
        $region32: #{tpu_custom_call.1} parent=11 // pred_fallthru
          _
      $region12: #{tpu_custom_call.1} parent=5 // pred_fallthru
        _
      %p256 = scmp.lt.s32.totalorder %s23, 2
      // Predicated region
      $region33: #{tpu_custom_call.1} parent=5 // pred_check
        %p257 = pneg %p256
      $region34: #{tpu_custom_call.1} parent=5 // pred_check_branch
        %259 = sbr.rel (%p257) target = $region36
      $region35: #{tpu_custom_call.1} parent=5 // pred_region
        // Predicated region
        $region37: #{tpu_custom_call.1} parent=35 // pred_check
          %p260 = pneg %p43
        $region38: #{tpu_custom_call.1} parent=35 // pred_check_branch
          %262 = sbr.rel (%p260) target = $region40
        $region39: #{tpu_custom_call.1} parent=35 // pred_region
          %s263 = sand.u32 %s33, 1
          %s264 = scalar_lea.sflag [#allocation3], %s263
          %s265 = sand.u32 %s33, 1
          %s266 = smul.addr %s265, 8
          %s267 = scalar_lea.vmem [#allocation2], %s266
          %s269 = ssub.s32 128, 128
          %270 = vsyncadd %s264, %s269
          %s271 = smul.addr %s23, 128
          %s272 = scalar_lea.hbm %s0, %s271
          %s274 = sshll.u32 %s267, 4
          %s275 = int_to_ptr.vmem [resolvable:$true] %s274
          %277 = dma.hbm_to_vmem [thread:$0]  %s272, 128, %s275, %s264
        $region40: #{tpu_custom_call.1} parent=35 // pred_fallthru
          _
        // Predicated region
        $region41: #{tpu_custom_call.1} parent=35 // pred_check
          %p278 = pneg %p69
        $region42: #{tpu_custom_call.1} parent=35 // pred_check_branch
          %280 = sbr.rel (%p278) target = $region44
        $region43: #{tpu_custom_call.1} parent=35 // pred_region
          %s281 = sand.u32 %s23, 1
          %s282 = scalar_lea.sflag [#allocation6], %s281
          %s283 = sand.u32 %s59, 1
          %s284 = smul.addr %s283, 8
          %s285 = scalar_lea.vmem [#allocation5], %s284
          %s287 = ssub.s32 128, 128
          %288 = vsyncadd %s282, %s287
          %s289 = smul.addr %s23, 128
          %s290 = scalar_lea.hbm %s1, %s289
          %s292 = sshll.u32 %s285, 4
          %s293 = int_to_ptr.vmem [resolvable:$true] %s292
          %295 = dma.hbm_to_vmem [thread:$0]  %s290, 128, %s293, %s282
        $region44: #{tpu_custom_call.1} parent=35 // pred_fallthru
          _
      $region36: #{tpu_custom_call.1} parent=5 // pred_fallthru
        _
      %p296 = scmp.le.s32.totalorder 1, %s23
      %p297 = scmp.lt.s32.totalorder %s23, 3
      %p298 = pnand %p296, %p297
      %p299 = pneg %p298
      // Predicated region
      $region45: #{tpu_custom_call.1} parent=5 // pred_check
        _
      $region46: #{tpu_custom_call.1} parent=5 // pred_check_branch
        %301 = sbr.rel (%p298) target = $region48
      $region47: #{tpu_custom_call.1} parent=5 // pred_region
        %s302 = ssub.s32 %s23, 1
        %s303 = sand.u32 %s36, 1
        %s304 = scalar_lea.sflag [#allocation3], %s303
        %s305 = sand.u32 %s36, 1
        %s306 = smul.addr %s305, 8
        %s307 = scalar_lea.vmem [#allocation2], %s306
        // Predicated region
        $region49: #{tpu_custom_call.1} parent=47 // pred_check
          %p308 = pneg %p49
        $region50: #{tpu_custom_call.1} parent=47 // pred_check_branch
          %310 = sbr.rel (%p308) target = $region52
        $region51: #{tpu_custom_call.1} parent=47 // pred_region
          %311 = dma.done %s304, 128
        $region52: #{tpu_custom_call.1} parent=47 // pred_fallthru
          _
        %s312 = sand.u32 %s28, 1
        %s313 = scalar_lea.sflag [#allocation6], %s312
        %s314 = sand.u32 %s62, 1
        %s315 = smul.addr %s314, 8
        %s316 = scalar_lea.vmem [#allocation5], %s315
        // Predicated region
        $region53: #{tpu_custom_call.1} parent=47 // pred_check
          %p317 = pneg %p75
        $region54: #{tpu_custom_call.1} parent=47 // pred_check_branch
          %319 = sbr.rel (%p317) target = $region56
        $region55: #{tpu_custom_call.1} parent=47 // pred_region
          %320 = dma.done %s313, 128
        $region56: #{tpu_custom_call.1} parent=47 // pred_fallthru
          _
        // Predicated region
        $region57: #{tpu_custom_call.1} parent=47 // pred_check
          %p321 = pneg %p96
        $region58: #{tpu_custom_call.1} parent=47 // pred_check_branch
          %323 = sbr.rel (%p321) target = $region60
        $region59: #{tpu_custom_call.1} parent=47 // pred_region
          %324 = dma.done [#allocation6], 256
        $region60: #{tpu_custom_call.1} parent=47 // pred_fallthru
          _
        // Predicated region
        $region61: #{tpu_custom_call.1} parent=47 // pred_check
          %p325 = pneg %p138
        $region62: #{tpu_custom_call.1} parent=47 // pred_check_branch
          %327 = sbr.rel (%p325) target = $region64
        $region63: #{tpu_custom_call.1} parent=47 // pred_region
          %328 = dma.done [#allocation9], 256
        $region64: #{tpu_custom_call.1} parent=47 // pred_fallthru
          _
        %s329 = sand.u32 %s36, 1
        %s330 = scalar_lea.sflag [#allocation3], %s329
        %s331 = sand.u32 %s36, 1
        %s332 = smul.addr %s331, 8
        %s333 = scalar_lea.vmem [#allocation2], %s332
        %p334 = pneg %p49
        %p335 = pneg %p46
        %s336 = sand.u32 %s28, 1
        %s337 = scalar_lea.sflag [#allocation6], %s336
        %s338 = sand.u32 %s62, 1
        %s339 = smul.addr %s338, 8
        %s340 = scalar_lea.vmem [#allocation5], %s339
        %p341 = pneg %p75
        %p342 = pneg %p72
        %p343 = pneg %p96
        %p344 = pneg %p93
        %p345 = pneg %p117
        %p346 = pneg %p114
        %p347 = pneg %p138
        %p348 = pneg %p135
        %p349 = pneg %p159
        %p350 = pneg %p156
        %p351 = pneg %p180
        %p352 = pneg %p177
        %p353 = pneg %p206
        %p354 = pneg %p203
        %s355 = sand.u32 %s193, 1
        %s356 = scalar_lea.sflag [#allocation4], %s355
        %s357 = sand.u32 %s193, 1
        %s358 = smul.addr %s357, 8
        %s359 = scalar_lea.vmem [#allocation10], %s358
        %v361 = vld [vmem:[%s307] sm:$0xff]
        %v362 = vpack.c.bf16 %v361, %v361
        %v363 = vld [vmem:[%s316] sm:$0xff]
        %v364 = vpack.c.bf16 %v363, %v363
        %v365 = vld [vmem:[#allocation7] sm:$0xf]
        %v366 = vld [vmem:[#allocation7 + $0x4] sm:$0xf]
        %v367 = vld [vmem:[#allocation7 + $0x8] sm:$0xf]
        %v368 = vld [vmem:[#allocation7 + $0xc] sm:$0xf]
        %v369 = vld [vmem:[%s3] sm:$0x1]
        %v371 = vlaneseq
        %v372 = vshrl.u32 %v371, 7
        %v373 = vsub.s32 0, %v372
        %v374 = vrot.slane %v369, %v373
        %v380 = vunpack.c.l.b16 %v365
        %v381 = vunpack.c.l.b16 %v366
        %v382 = vunpack.c.l.b16 %v367
        %v383 = vunpack.c.l.b16 %v368
        %v384 = vpack.c.b16 %v381, %v380
        %v385 = vpack.c.b16 %v383, %v382
        %vm388 = vcmask 261120
        %v390 = vsel %vm388, %v362, 0
        %392 = vmatprep.subr.bf16.mxu0 0
        %393 = vmatpush1.bf16.msra.mxu0 %v384
        %394 = vmatprep.subr.bf16.mxu0 0
        %395 = vmatpush1.bf16.msra.mxu0 %v385
        %396 = vmatprep.subr.bf16.mxu0 0
        %397 = vmatpush1.bf16.msra.mxu0 0
        %398 = vmatprep.subr.bf16.mxu0 0
        %399 = vmatpush1.bf16.msra.mxu0 0
        %400 = vmatprep.subr.bf16.mxu0 0
        %401 = vmatpush1.bf16.msra.mxu0 0
        %402 = vmatprep.subr.bf16.mxu0 0
        %403 = vmatpush1.bf16.msra.mxu0 0
        %404 = vmatprep.subr.bf16.mxu0 0
        %405 = vmatpush1.bf16.msra.mxu0 0
        %406 = vmatprep.subr.bf16.mxu0 0
        %407 = vmatpush1.bf16.msra.mxu0 0
        %408 = vmatprep.subr.bf16.mxu0 0
        %409 = vmatpush1.bf16.msra.mxu0 0
        %410 = vmatprep.subr.bf16.mxu0 0
        %411 = vmatpush1.bf16.msra.mxu0 0
        %412 = vmatprep.subr.bf16.mxu0 0
        %413 = vmatpush1.bf16.msra.mxu0 0
        %414 = vmatprep.subr.bf16.mxu0 0
        %415 = vmatpush1.bf16.msra.mxu0 0
        %416 = vmatprep.subr.bf16.mxu0 0
        %417 = vmatpush1.bf16.msra.mxu0 0
        %418 = vmatprep.subr.bf16.mxu0 0
        %419 = vmatpush1.bf16.msra.mxu0 0
        %420 = vmatprep.subr.bf16.mxu0 0
        %421 = vmatpush1.bf16.msra.mxu0 0
        %422 = vmatprep.subr.bf16.mxu0 0
        %423 = vmatpush1.bf16.msra.mxu0 0
        %424 = vmatprep.mubr.bf16.mxu0 0
        %425 = vmatmul.mubr.bf16.gmra.mrb[0].mxu0 %v390
        %v426 = vpop.f32.mrb[0].mxu0
        %v427 = vadd.f32 %v374, %v426
        %v428 = vpop.f32.mrb[0].mxu0
        %v429 = vpop.f32.mrb[0].mxu0
        %v430 = vpop.f32.mrb[0].mxu0
        %431 = vdwg.mxu0
        %v433 = vsel %vm388, %v364, 0
        %435 = vmatprep.subr.bf16.mxu0 0
        %436 = vmatpush1.bf16.msra.mxu0 %v384
        %437 = vmatprep.subr.bf16.mxu0 0
        %438 = vmatpush1.bf16.msra.mxu0 %v385
        %439 = vmatprep.subr.bf16.mxu0 0
        %440 = vmatpush1.bf16.msra.mxu0 0
        %441 = vmatprep.subr.bf16.mxu0 0
        %442 = vmatpush1.bf16.msra.mxu0 0
        %443 = vmatprep.subr.bf16.mxu0 0
        %444 = vmatpush1.bf16.msra.mxu0 0
        %445 = vmatprep.subr.bf16.mxu0 0
        %446 = vmatpush1.bf16.msra.mxu0 0
        %447 = vmatprep.subr.bf16.mxu0 0
        %448 = vmatpush1.bf16.msra.mxu0 0
        %449 = vmatprep.subr.bf16.mxu0 0
        %450 = vmatpush1.bf16.msra.mxu0 0
        %451 = vmatprep.subr.bf16.mxu0 0
        %452 = vmatpush1.bf16.msra.mxu0 0
        %453 = vmatprep.subr.bf16.mxu0 0
        %454 = vmatpush1.bf16.msra.mxu0 0
        %455 = vmatprep.subr.bf16.mxu0 0
        %456 = vmatpush1.bf16.msra.mxu0 0
        %457 = vmatprep.subr.bf16.mxu0 0
        %458 = vmatpush1.bf16.msra.mxu0 0
        %459 = vmatprep.subr.bf16.mxu0 0
        %460 = vmatpush1.bf16.msra.mxu0 0
        %461 = vmatprep.subr.bf16.mxu0 0
        %462 = vmatpush1.bf16.msra.mxu0 0
        %463 = vmatprep.subr.bf16.mxu0 0
        %464 = vmatpush1.bf16.msra.mxu0 0
        %465 = vmatprep.subr.bf16.mxu0 0
        %466 = vmatpush1.bf16.msra.mxu0 0
        %467 = vmatprep.mubr.bf16.mxu0 0
        %468 = vmatmul.mubr.bf16.gmra.mrb[0].mxu0 %v433
        %v469 = vpop.f32.mrb[0].mxu0
        %v470 = vadd.f32 %v374, %v469
        %v471 = vpop.f32.mrb[0].mxu0
        %v472 = vpop.f32.mrb[0].mxu0
        %v473 = vpop.f32.mrb[0].mxu0
        %474 = vdwg.mxu0
        %v475 = vmax.f32 %v427, 0.0
        %v476 = vpack.c.bf16 %v475, %v475
        %v477 = vmax.f32 %v470, 0.0
        %v478 = vpack.c.bf16 %v477, %v477
        %v479 = vld [vmem:[#allocation8] sm:$0xf]
        %v480 = vld [vmem:[#allocation8 + $0x4] sm:$0xf]
        %v481 = vld [vmem:[#allocation8 + $0x8] sm:$0xf]
        %v482 = vld [vmem:[#allocation8 + $0xc] sm:$0xf]
        %v483 = vld [vmem:[%s5] sm:$0xf]
        %v484 = vld [vmem:[%s5 + $0x4] sm:$0xf]
        %v485 = vld [vmem:[%s5 + $0x8] sm:$0xf]
        %v486 = vld [vmem:[%s5 + $0xc] sm:$0xf]
        %v491 = vunpack.c.l.b16 %v483
        %v492 = vunpack.c.l.b16 %v484
        %v493 = vunpack.c.l.b16 %v485
        %v494 = vunpack.c.l.b16 %v486
        %v495 = vpack.c.b16 %v492, %v491
        %v496 = vpack.c.b16 %v494, %v493
        %v500 = vsel %vm388, %v478, 0
        %502 = vmatprep.subr.bf16.mxu0 0
        %503 = vmatpush1.bf16.msra.mxu0 %v495
        %504 = vmatprep.subr.bf16.mxu0 0
        %505 = vmatpush1.bf16.msra.mxu0 %v496
        %506 = vmatprep.subr.bf16.mxu0 0
        %507 = vmatpush1.bf16.msra.mxu0 0
        %508 = vmatprep.subr.bf16.mxu0 0
        %509 = vmatpush1.bf16.msra.mxu0 0
        %510 = vmatprep.subr.bf16.mxu0 0
        %511 = vmatpush1.bf16.msra.mxu0 0
        %512 = vmatprep.subr.bf16.mxu0 0
        %513 = vmatpush1.bf16.msra.mxu0 0
        %514 = vmatprep.subr.bf16.mxu0 0
        %515 = vmatpush1.bf16.msra.mxu0 0
        %516 = vmatprep.subr.bf16.mxu0 0
        %517 = vmatpush1.bf16.msra.mxu0 0
        %518 = vmatprep.subr.bf16.mxu0 0
        %519 = vmatpush1.bf16.msra.mxu0 0
        %520 = vmatprep.subr.bf16.mxu0 0
        %521 = vmatpush1.bf16.msra.mxu0 0
        %522 = vmatprep.subr.bf16.mxu0 0
        %523 = vmatpush1.bf16.msra.mxu0 0
        %524 = vmatprep.subr.bf16.mxu0 0
        %525 = vmatpush1.bf16.msra.mxu0 0
        %526 = vmatprep.subr.bf16.mxu0 0
        %527 = vmatpush1.bf16.msra.mxu0 0
        %528 = vmatprep.subr.bf16.mxu0 0
        %529 = vmatpush1.bf16.msra.mxu0 0
        %530 = vmatprep.subr.bf16.mxu0 0
        %531 = vmatpush1.bf16.msra.mxu0 0
        %532 = vmatprep.subr.bf16.mxu0 0
        %533 = vmatpush1.bf16.msra.mxu0 0
        %534 = vmatprep.mubr.bf16.mxu0 0
        %535 = vmatmul.mubr.bf16.gmra.mrb[0].mxu0 %v500
        %v536 = vpop.f32.mrb[0].mxu0
        %v537 = vadd.f32 0.0, %v536
        %v538 = vpop.f32.mrb[0].mxu0
        %v539 = vpop.f32.mrb[0].mxu0
        %v540 = vpop.f32.mrb[0].mxu0
        %541 = vdwg.mxu0
        %v546 = vunpack.c.l.b16 %v479
        %v547 = vunpack.c.l.b16 %v480
        %v548 = vunpack.c.l.b16 %v481
        %v549 = vunpack.c.l.b16 %v482
        %v550 = vpack.c.b16 %v547, %v546
        %v551 = vpack.c.b16 %v549, %v548
        %v555 = vsel %vm388, %v476, 0
        %557 = vmatprep.subr.bf16.mxu0 0
        %558 = vmatpush1.bf16.msra.mxu0 %v550
        %559 = vmatprep.subr.bf16.mxu0 0
        %560 = vmatpush1.bf16.msra.mxu0 %v551
        %561 = vmatprep.subr.bf16.mxu0 0
        %562 = vmatpush1.bf16.msra.mxu0 0
        %563 = vmatprep.subr.bf16.mxu0 0
        %564 = vmatpush1.bf16.msra.mxu0 0
        %565 = vmatprep.subr.bf16.mxu0 0
        %566 = vmatpush1.bf16.msra.mxu0 0
        %567 = vmatprep.subr.bf16.mxu0 0
        %568 = vmatpush1.bf16.msra.mxu0 0
        %569 = vmatprep.subr.bf16.mxu0 0
        %570 = vmatpush1.bf16.msra.mxu0 0
        %571 = vmatprep.subr.bf16.mxu0 0
        %572 = vmatpush1.bf16.msra.mxu0 0
        %573 = vmatprep.subr.bf16.mxu0 0
        %574 = vmatpush1.bf16.msra.mxu0 0
        %575 = vmatprep.subr.bf16.mxu0 0
        %576 = vmatpush1.bf16.msra.mxu0 0
        %577 = vmatprep.subr.bf16.mxu0 0
        %578 = vmatpush1.bf16.msra.mxu0 0
        %579 = vmatprep.subr.bf16.mxu0 0
        %580 = vmatpush1.bf16.msra.mxu0 0
        %581 = vmatprep.subr.bf16.mxu0 0
        %582 = vmatpush1.bf16.msra.mxu0 0
        %583 = vmatprep.subr.bf16.mxu0 0
        %584 = vmatpush1.bf16.msra.mxu0 0
        %585 = vmatprep.subr.bf16.mxu0 0
        %586 = vmatpush1.bf16.msra.mxu0 0
        %587 = vmatprep.subr.bf16.mxu0 0
        %588 = vmatpush1.bf16.msra.mxu0 0
        %589 = vmatprep.mubr.bf16.mxu0 0
        %590 = vmatmul.mubr.bf16.gmra.mrb[0].mxu0 %v555
        %v591 = vpop.f32.mrb[0].mxu0
        %v592 = vadd.f32 %v537, %v591
        %v593 = vpop.f32.mrb[0].mxu0
        %v594 = vpop.f32.mrb[0].mxu0
        %v595 = vpop.f32.mrb[0].mxu0
        %596 = vdwg.mxu0
        %v597 = vld [vmem:[%s6] sm:$0x1]
        %v599 = vlaneseq
        %v600 = vshrl.u32 %v599, 7
        %v601 = vsub.s32 0, %v600
        %v602 = vrot.slane %v597, %v601
        %v604 = vadd.f32 %v592, %v602
        %605 = vst.msk [vmem:[%s359] sm:$0xff] %vm388, %v604
        %s606 = sand.u32 %s193, 1
        %s607 = scalar_lea.sflag [#allocation4], %s606
        %s608 = sand.u32 %s193, 1
        %s609 = smul.addr %s608, 8
        %s610 = scalar_lea.vmem [#allocation10], %s609
        // Predicated region
        $region65: #{tpu_custom_call.1} parent=47 // pred_check
          %p611 = pneg %p203
        $region66: #{tpu_custom_call.1} parent=47 // pred_check_branch
          %613 = sbr.rel (%p611) target = $region68
        $region67: #{tpu_custom_call.1} parent=47 // pred_region
          %s615 = ssub.s32 128, 128
          %616 = vsyncadd %s607, %s615
          %s617 = smul.addr %s28, 128
          %s618 = scalar_lea.hbm %s7, %s617
          %s620 = sshll.u32 %s610, 4
          %s621 = int_to_ptr.vmem [resolvable:$true] %s620
          %623 = dma.vmem_to_hbm [thread:$0]  %s621, 128, %s618, %s607
        $region68: #{tpu_custom_call.1} parent=47 // pred_fallthru
          _
      $region48: #{tpu_custom_call.1} parent=5 // pred_fallthru
        _
      %p624 = scmp.le.s32.totalorder 2, %s23
      // Predicated region
      $region69: #{tpu_custom_call.1} parent=5 // pred_check
        %p625 = pneg %p624
      $region70: #{tpu_custom_call.1} parent=5 // pred_check_branch
        %627 = sbr.rel (%p625) target = $region72
      $region71: #{tpu_custom_call.1} parent=5 // pred_region
        %s628 = ssub.s32 %s23, 2
        // Predicated region
        $region73: #{tpu_custom_call.1} parent=71 // pred_check
          %p629 = pneg %p209
        $region74: #{tpu_custom_call.1} parent=71 // pred_check_branch
          %631 = sbr.rel (%p629) target = $region76
        $region75: #{tpu_custom_call.1} parent=71 // pred_region
          %s632 = sand.u32 %s194, 1
          %s633 = scalar_lea.sflag [#allocation4], %s632
          %s634 = sand.u32 %s194, 1
          %s635 = smul.addr %s634, 8
          %s636 = scalar_lea.vmem [#allocation10], %s635
          %637 = dma.done %s633, 128
        $region76: #{tpu_custom_call.1} parent=71 // pred_fallthru
          _
      $region72: #{tpu_custom_call.1} parent=5 // pred_fallthru
        _
    $region6: #{tpu_custom_call.1} parent=1 // loop_footer
      %s27 = sadd.s32 1, %s23
    $region7: #{tpu_custom_call.1} parent=1 // loop_footer_branch
      %22 = sbr.rel target = $region3
    $region8: #{tpu_custom_call.1} parent=1 // loop_exit
      _
    %638 = vsyncpa [#allocation3], 1
    %s639 = scalar_lea.sflag [#allocation3], 1
    %640 = vsyncpa %s639, 1
    %641 = vsyncpa [#allocation6], 1
    %s642 = scalar_lea.sflag [#allocation6], 1
    %643 = vsyncpa %s642, 1
    %644 = vsyncpa [#allocation9], 1
    %645 = vsyncpa [#allocation4], 1
    %s646 = scalar_lea.sflag [#allocation4], 1
    %647 = vsyncpa %s646, 1

</llo_original>
